<compile_context>
chip_gen: v6e
topology: v6e:2x2x1
jax: 0.10.0
libtpu: 0.0.40
codegen_flags: <defaults>
</compile_context>

<pallas_src>
import math

import jax
import jax.numpy as jnp
from jax.experimental import pallas as pl
from jax.experimental.pallas import tpu as pltpu


def _round_up(x: int, m: int) -> int:
    return ((x + m - 1) // m) * m


def _cdiv(a: int, b: int) -> int:
    return (a + b - 1) // b


def _pad_axis(a, target: int, axis: int):
    pad = target - a.shape[axis]
    if pad <= 0:
        return a
    widths = [(0, 0)] * a.ndim
    widths[axis] = (0, pad)
    return jnp.pad(a, widths)


def _vmem_capacity_bytes() -> int:
    """Per-core VMEM capacity; conservative fallback = v7x's 64 MiB."""
    try:
        return int(pltpu.get_tpu_info().vmem_capacity_bytes)
    except Exception:
        return 64 << 20


# ---------------------------------------------------------------------------
# Kernels (omega_0 already folded into the main weight / bias).
# ---------------------------------------------------------------------------

def _fused_shortcut_kernel(x_ref, w_ref, b_ref, o_ref):
    """w_ref = [omega_0*W | W_shortcut], shape (in_f_x, 2*out_f_p); b_ref likewise."""
    x = x_ref[...]
    acc = jnp.dot(x, w_ref[...], preferred_element_type=jnp.float32) + b_ref[...]
    half = acc.shape[-1] // 2                      # lane-aligned split (multiple of 128)
    out = jnp.sin(acc[:, :half]) + acc[:, half:]
    o_ref[...] = jnp.maximum(out, 0.0).astype(o_ref.dtype)


def _identity_shortcut_kernel(x_ref, w_ref, b_ref, o_ref):
    """in_f == out_f: identity shortcut, no second matmul.
    The contraction dim is NOT padded; the residual is widened in-kernel to the
    lane-dense output width (padded columns of W/b are zero -> sin(0)=0)."""
    x = x_ref[...]
    acc = jnp.dot(x, w_ref[...], preferred_element_type=jnp.float32) + b_ref[...]
    out = jnp.sin(acc)
    xf = x.astype(jnp.float32)
    pad = out.shape[-1] - xf.shape[-1]
    if pad:
        xf = jnp.concatenate(
            [xf, jnp.zeros((xf.shape[0], pad), jnp.float32)], axis=-1)
    o_ref[...] = jnp.maximum(out + xf, 0.0).astype(o_ref.dtype)


# ---------------------------------------------------------------------------
# One-time parameter preparation (fold omega_0, pad, concatenate, cast).
# ---------------------------------------------------------------------------

def prepare_params(w, b, ws, bs, *, omega_0=30.0, compute_dtype=None,
                   padded_in_features=None):
    """Fold omega_0 into the main Linear, pad out-features to a multiple of 128
    (lane-dense stores), concatenate the shortcut Linear (if any) into one wide
    matmul, optionally cast weights to compute_dtype (bf16 recommended on v6e/v7x),
    and optionally accept a padded input width (zero rows) for chained-block handoff."""
    in_f, out_f = w.shape
    out_f_p = _round_up(out_f, 128)
    in_f_x = max(padded_in_features or in_f, in_f)
    dt_w = compute_dtype if compute_dtype is not None else w.dtype

    w_main = _pad_axis(w * omega_0, out_f_p, axis=1)
    b_main = _pad_axis(b * omega_0, out_f_p, axis=1)

    if ws is None:
        # Identity shortcut (PyTorch: in_features == out_features).
        assert in_f == out_f, "identity shortcut requires in_features == out_features"
        assert in_f_x <= out_f_p, "padded input width must not exceed padded output width"
        w_full = _pad_axis(w_main, in_f_x, axis=0)           # zero rows for padded inputs
        return dict(kind="identity",
                    w=w_full.astype(dt_w), b=b_main.astype(jnp.float32),
                    out_f=out_f, out_f_p=out_f_p)

    ws_p = _pad_axis(ws, out_f_p, axis=1)
    bs_p = _pad_axis(bs, out_f_p, axis=1)
    w_full = _pad_axis(jnp.concatenate([w_main, ws_p], axis=1), in_f_x, axis=0)
    b_full = jnp.concatenate([b_main, bs_p], axis=1)
    return dict(kind="fused",
                w=w_full.astype(dt_w), b=b_full.astype(jnp.float32),
                out_f=out_f, out_f_p=out_f_p)


# ---------------------------------------------------------------------------
# Wrapper
# ---------------------------------------------------------------------------

def sine_residual_block(x, params, *, block_n=None, compute_dtype=None,
                        slice_output=True, vmem_budget_bytes=None):
    """x: (N, in_features[_padded]) ; params: output of prepare_params().
    slice_output=False returns the lane-padded (N, out_f_p) activation for
    chained blocks (next layer consumes it with padded_in_features=out_f_p)."""
    N, in_f_x = x.shape
    w, b = params["w"], params["b"]
    assert in_f_x == w.shape[0], "x feature width must match prepared weight rows"
    out_f, out_f_p = params["out_f"], params["out_f_p"]
    fused = params["kind"] == "fused"
    out_width = w.shape[1]
    out_dtype = x.dtype                              # captured before any compute cast

    # Optional matmul-dtype cast (bf16 halves x/W HBM+VMEM traffic on v6e/v7x).
    if compute_dtype is not None:
        if x.dtype != compute_dtype:
            x = x.astype(compute_dtype)
        if w.dtype != compute_dtype:
            w = w.astype(compute_dtype)

    x_bytes = jnp.dtype(x.dtype).itemsize
    w_bytes = jnp.dtype(w.dtype).itemsize
    o_bytes = jnp.dtype(out_dtype).itemsize

    # ---- generation-aware VMEM budgeting (physically padded (8,128) tiles) ----
    vmem_capacity = _vmem_capacity_bytes()           # 128 MiB v5e/v6e, 64 MiB v7x
    vmem_cap = (vmem_capacity * 7) // 8              # ~112 MiB / ~56 MiB usable cap
    if vmem_budget_bytes is None:
        vmem_budget_bytes = vmem_cap - (4 << 20)

    in_lanes = _round_up(in_f_x, 128)                # x tile lane padding
    w_sublanes = _round_up(in_f_x, 8)                # W sublane padding
    # Grid-invariant weight + bias, single-buffered (pl.Buffered(1)).
    fixed = w_sublanes * out_width * w_bytes + 8 * out_width * 4
    per_row = 2 * (in_lanes * x_bytes + out_f_p * o_bytes)   # double-buffered x + out rows

    # ---- batch tiling ----
    if block_n is None:
        avail = max(vmem_budget_bytes - fixed, 8 * per_row)
        hard_cap = 4096 if per_row <= 8192 else (2048 if per_row <= 32768 else 1024)
        block_n = min(hard_cap, max(8, avail // per_row))
        # Keep >= ~8 grid steps: feeds both v7x TensorCores and keeps the pipeline deep.
        block_n = min(block_n, _round_up(_cdiv(N, 8), 8))
    block_n = max(8, (int(block_n) // 8) * 8)        # (8,128) sublane rule
    block_n = min(block_n, _round_up(N, 8))

    # No wrapper jnp.pad of x: ragged last block's OOB rows feed only output rows
    # beyond N, which are never written back (out_shape first dim is exactly N).
    grid = (_cdiv(N, block_n),)

    needed = fixed + block_n * per_row + (2 << 20)
    # +fixed headroom so the double-buffered-weight fallback path also fits.
    vmem_limit = int(min(max(needed + fixed, 16 << 20), vmem_cap))

    rows = grid[0] * block_n
    cost = pl.CostEstimate(
        flops=2 * rows * in_f_x * out_width,
        transcendentals=rows * out_f_p,
        bytes_accessed=(N * in_f_x * x_bytes + in_f_x * out_width * w_bytes
                        + out_width * 4 + N * out_f_p * o_bytes),
    )

    kernel = _fused_shortcut_kernel if fused else _identity_shortcut_kernel

    def _call(single_buffer_weights: bool):
        wb_kwargs = dict(pipeline_mode=pl.Buffered(1)) if single_buffer_weights else {}
        return pl.pallas_call(
            kernel,
            out_shape=jax.ShapeDtypeStruct((N, out_f_p), out_dtype),
            grid_spec=pltpu.PrefetchScalarGridSpec(
                num_scalar_prefetch=0,
                grid=grid,
                in_specs=[
                    pl.BlockSpec((block_n, in_f_x), lambda i: (i, 0)),   # x tile (pipelined)
                    pl.BlockSpec((in_f_x, out_width), lambda i: (0, 0),  # fused/main weight
                                 **wb_kwargs),
                    pl.BlockSpec((1, out_width), lambda i: (0, 0),       # fused/main bias
                                 **wb_kwargs),
                ],
                out_specs=pl.BlockSpec((block_n, out_f_p), lambda i: (i, 0)),
            ),
            compiler_params=pltpu.CompilerParams(
                dimension_semantics=("parallel",),
                vmem_limit_bytes=vmem_limit,
            ),
            cost_estimate=cost,
        )(x, w, b)

    try:
        out_p = _call(True)           # single-buffered grid-invariant weights
    except Exception:
        out_p = _call(False)          # fallback if pipeline_mode=Buffered(1) unsupported

    if slice_output and out_f != out_f_p:
        out_p = out_p[:, :out_f]
    return out_p


# ---------------------------------------------------------------------------
# Init / reference (raw, un-folded parameters)
# ---------------------------------------------------------------------------

def init_params(key, in_features, out_features, *, is_first=False, omega_0=30.0):
    """Deterministic init matching the PyTorch module; returns raw params.
    Weights stored as (in_f, out_f) == transposed PyTorch layout."""
    k_w, k_b, k_ws, k_bs = jax.random.split(key, 4)
    if is_first:
        bound_w = 1.0 / in_features
    else:
        bound_w = math.sqrt(6.0 / in_features) / omega_0
    w = jax.random.uniform(k_w, (in_features, out_features), jnp.float32,
                           minval=-bound_w, maxval=bound_w)
    bound_b = 1.0 / math.sqrt(in_features)
    b = jax.random.uniform(k_b, (1, out_features), jnp.float32,
                           minval=-bound_b, maxval=bound_b)
    if in_features == out_features:
        return w, b, None, None          # PyTorch: identity shortcut
    ws = jax.random.uniform(k_ws, (in_features, out_features), jnp.float32,
                            minval=-bound_b, maxval=bound_b)
    bs = jax.random.uniform(k_bs, (1, out_features), jnp.float32,
                            minval=-bound_b, maxval=bound_b)
    return w, b, ws, bs


def reference_forward(x, w, b, ws, bs, omega_0=30.0):
    out = jnp.sin(omega_0 * (x @ w + b))
    sc = x if ws is None else x @ ws + bs
    return jnp.maximum(out + sc, 0.0)


if __name__ == "__main__":
    key = jax.random.PRNGKey(0)
    k_x1, k_p1, k_x2, k_p2, k_x3, k_pa, k_pb = jax.random.split(key, 7)
    omega_0 = 30.0

    # Case 1: in_f != out_f -> fused (concatenated) Linear shortcut; N not a
    # multiple of the block -> exercises the ragged (un-padded) last batch block.
    N1, in_f1, out_f1 = 20, 32, 64
    x1 = jax.random.normal(k_x1, (N1, in_f1), jnp.float32)
    w1, b1, ws1, bs1 = init_params(k_p1, in_f1, out_f1, omega_0=omega_0)
    p1 = prepare_params(w1, b1, ws1, bs1, omega_0=omega_0)
    out1 = jax.block_until_ready(sine_residual_block(x1, p1))
    ref1 = reference_forward(x1, w1, b1, ws1, bs1, omega_0)
    assert out1.shape == (N1, out_f1)
    assert jnp.allclose(out1, ref1, atol=1e-4, rtol=1e-4), "mismatch (fused shortcut)"

    # Case 2: in_f == out_f -> identity shortcut, contraction dim NOT padded
    # (K=64), output lane-padded to 128 with the residual widened in-kernel.
    N2, f2 = 16, 64
    x2 = jax.random.normal(k_x2, (N2, f2), jnp.float32)
    w2, b2, ws2, bs2 = init_params(k_p2, f2, f2, omega_0=omega_0)
    p2 = prepare_params(w2, b2, ws2, bs2, omega_0=omega_0)
    out2 = jax.block_until_ready(sine_residual_block(x2, p2))
    ref2 = reference_forward(x2, w2, b2, ws2, bs2, omega_0)
    assert out2.shape == (N2, f2)
    assert jnp.allclose(out2, ref2, atol=1e-4, rtol=1e-4), "mismatch (identity shortcut)"

    # Case 3: two chained blocks with padded feature handoff (no slice between
    # layers) and bf16 compute dtype (f32 accumulation + f32 sin/add/relu).
    N3, in_f3, mid_f3 = 16, 32, 64
    x3 = jax.random.normal(k_x3, (N3, in_f3), jnp.float32)
    wa, ba, wsa, bsa = init_params(k_pa, in_f3, mid_f3, omega_0=omega_0)
    wb, bb, wsb, bsb = init_params(k_pb, mid_f3, mid_f3, omega_0=omega_0)
    pa = prepare_params(wa, ba, wsa, bsa, omega_0=omega_0, compute_dtype=jnp.bfloat16)
    pb = prepare_params(wb, bb, wsb, bsb, omega_0=omega_0, compute_dtype=jnp.bfloat16,
                        padded_in_features=pa["out_f_p"])
    y_mid = sine_residual_block(x3, pa, compute_dtype=jnp.bfloat16, slice_output=False)
    out3 = jax.block_until_ready(
        sine_residual_block(y_mid, pb, compute_dtype=jnp.bfloat16))
    ref3 = reference_forward(reference_forward(x3, wa, ba, wsa, bsa, omega_0),
                             wb, bb, wsb, bsb, omega_0)
    assert out3.shape == (N3, mid_f3)
    assert jnp.allclose(out3, ref3, atol=5e-2, rtol=5e-2), "mismatch (chained bf16)"

    print("KERNEL_OK")
</pallas_src>

<mosaic_0001>
module attributes {stable_mosaic.version = 11 : i64} {
  func.func @_fused_shortcut_kernel(%arg0: i32, %arg1: memref<8x32xf32, #tpu.memory_space<vmem>>, %arg2: memref<32x256xf32, #tpu.memory_space<vmem>>, %arg3: memref<1x256xf32, #tpu.memory_space<vmem>>, %arg4: memref<8x128xf32, #tpu.memory_space<vmem>>) attributes {dimension_semantics = [#tpu.dimension_semantics<parallel>], iteration_bounds = array<i64: 3>, scalar_prefetch = 0 : i64, scratch_operands = 0 : i64, tpu.core_type = #tpu.core_type<tc>, window_params = [{transform_indices = @transform_0, window_bounds = array<i64: 8, 32>}, {pipeline_mode = #tpu.pipeline_mode<synchronous>, transform_indices = @transform_1, window_bounds = array<i64: 32, 256>}, {pipeline_mode = #tpu.pipeline_mode<synchronous>, transform_indices = @transform_2, window_bounds = array<i64: 1, 256>}, {transform_indices = @transform_3, window_bounds = array<i64: 8, 128>}]} {
    %c0 = arith.constant 0 : index
    %c0_0 = arith.constant 0 : index
    %0 = vector.load %arg1[%c0, %c0_0] : memref<8x32xf32, #tpu.memory_space<vmem>>, vector<8x32xf32>
    %c0_1 = arith.constant 0 : index
    %c0_2 = arith.constant 0 : index
    %1 = vector.load %arg2[%c0_1, %c0_2] : memref<32x256xf32, #tpu.memory_space<vmem>>, vector<32x256xf32>
    %cst = arith.constant dense<0.000000e+00> : vector<8x256xf32>
    %2 = tpu.matmul %0, %1, %cst {dimension_numbers = #tpu.dot_dimension_numbers<[1], [0], [0], [1], [0, 0, 1, 1], [], []>} : vector<8x32xf32>, vector<32x256xf32>, vector<8x256xf32> -> vector<8x256xf32>
    %c0_3 = arith.constant 0 : index
    %c0_4 = arith.constant 0 : index
    %3 = vector.load %arg3[%c0_3, %c0_4] : memref<1x256xf32, #tpu.memory_space<vmem>>, vector<1x256xf32>
    %4 = vector.broadcast %3 : vector<1x256xf32> to vector<8x256xf32>
    %5 = arith.addf %2, %4 : vector<8x256xf32>
    %6 = vector.extract_strided_slice %5 {offsets = [0, 0], sizes = [8, 128], strides = [1, 1]} : vector<8x256xf32> to vector<8x128xf32>
    %7 = math.sin %6 : vector<8x128xf32>
    %8 = vector.extract_strided_slice %5 {offsets = [0, 128], sizes = [8, 128], strides = [1, 1]} : vector<8x256xf32> to vector<8x128xf32>
    %9 = arith.addf %7, %8 : vector<8x128xf32>
    %cst_5 = arith.constant 0.000000e+00 : f32
    %10 = vector.broadcast %cst_5 : f32 to vector<8x128xf32>
    %11 = arith.maximumf %9, %10 : vector<8x128xf32>
    %c0_6 = arith.constant 0 : index
    %c0_7 = arith.constant 0 : index
    %12 = vector.load %arg4[%c0_6, %c0_7] : memref<8x128xf32, #tpu.memory_space<vmem>>, vector<8x128xf32>
    tpu.vector_store %arg4[%c0_6, %c0_7], %11 {strides = array<i32>} : memref<8x128xf32, #tpu.memory_space<vmem>>, vector<8x128xf32>,
    return
  }
  func.func @transform_0(%arg0: i32) -> (i32, i32) {
    %c0_i32 = arith.constant 0 : i32
    %c0_i32_0 = arith.constant 0 : i32
    return %arg0, %c0_i32 : i32, i32
  }
  func.func @transform_1(%arg0: i32) -> (i32, i32) {
    %c0_i32 = arith.constant 0 : i32
    %c0_i32_0 = arith.constant 0 : i32
    %c0_i32_1 = arith.constant 0 : i32
    return %c0_i32, %c0_i32_0 : i32, i32
  }
  func.func @transform_2(%arg0: i32) -> (i32, i32) {
    %c0_i32 = arith.constant 0 : i32
    %c0_i32_0 = arith.constant 0 : i32
    %c0_i32_1 = arith.constant 0 : i32
    return %c0_i32, %c0_i32_0 : i32, i32
  }
  func.func @transform_3(%arg0: i32) -> (i32, i32) {
    %c0_i32 = arith.constant 0 : i32
    %c0_i32_0 = arith.constant 0 : i32
    return %arg0, %c0_i32 : i32, i32
  }
}

module attributes {stable_mosaic.version = 11 : i64} {
  func.func @_fused_shortcut_kernel(%arg0: i32, %arg1: memref<8x32xf32, #tpu.memory_space<vmem>>, %arg2: memref<32x256xf32, #tpu.memory_space<vmem>>, %arg3: memref<1x256xf32, #tpu.memory_space<vmem>>, %arg4: memref<8x128xf32, #tpu.memory_space<vmem>>) attributes {dimension_semantics = [#tpu.dimension_semantics<parallel>], iteration_bounds = array<i64: 3>, scalar_prefetch = 0 : i64, scratch_operands = 0 : i64, tpu.core_type = #tpu.core_type<tc>, window_params = [{transform_indices = @transform_0, window_bounds = array<i64: 8, 32>}, {pipeline_mode = #tpu.pipeline_mode<synchronous>, transform_indices = @transform_1, window_bounds = array<i64: 32, 256>}, {pipeline_mode = #tpu.pipeline_mode<synchronous>, transform_indices = @transform_2, window_bounds = array<i64: 1, 256>}, {transform_indices = @transform_3, window_bounds = array<i64: 8, 128>}]} {
    %c0 = arith.constant 0 : index
    %c0_0 = arith.constant 0 : index
    %0 = vector.load %arg1[%c0, %c0_0] : memref<8x32xf32, #tpu.memory_space<vmem>>, vector<8x32xf32>
    %c0_1 = arith.constant 0 : index
    %c0_2 = arith.constant 0 : index
    %1 = vector.load %arg2[%c0_1, %c0_2] : memref<32x256xf32, #tpu.memory_space<vmem>>, vector<32x256xf32>
    %cst = arith.constant dense<0.000000e+00> : vector<8x256xf32>
    %2 = tpu.matmul %0, %1, %cst {dimension_numbers = #tpu.dot_dimension_numbers<[1], [0], [0], [1], [0, 0, 1, 1], [], []>} : vector<8x32xf32>, vector<32x256xf32>, vector<8x256xf32> -> vector<8x256xf32>
    %c0_3 = arith.constant 0 : index
    %c0_4 = arith.constant 0 : index
    %3 = vector.load %arg3[%c0_3, %c0_4] : memref<1x256xf32, #tpu.memory_space<vmem>>, vector<1x256xf32>
    %4 = vector.broadcast %3 : vector<1x256xf32> to vector<8x256xf32>
    %5 = arith.addf %2, %4 : vector<8x256xf32>
    %6 = vector.extract_strided_slice %5 {offsets = [0, 0], sizes = [8, 128], strides = [1, 1]} : vector<8x256xf32> to vector<8x128xf32>
    %7 = math.sin %6 : vector<8x128xf32>
    %8 = vector.extract_strided_slice %5 {offsets = [0, 128], sizes = [8, 128], strides = [1, 1]} : vector<8x256xf32> to vector<8x128xf32>
    %9 = arith.addf %7, %8 : vector<8x128xf32>
    %cst_5 = arith.constant 0.000000e+00 : f32
    %10 = vector.broadcast %cst_5 : f32 to vector<8x128xf32>
    %11 = arith.maximumf %9, %10 : vector<8x128xf32>
    %c0_6 = arith.constant 0 : index
    %c0_7 = arith.constant 0 : index
    %12 = vector.load %arg4[%c0_6, %c0_7] : memref<8x128xf32, #tpu.memory_space<vmem>>, vector<8x128xf32>
    tpu.vector_store %arg4[%c0_6, %c0_7], %11 {strides = array<i32>} : memref<8x128xf32, #tpu.memory_space<vmem>>, vector<8x128xf32>,
    return
  }
  func.func @transform_0(%arg0: i32) -> (i32, i32) {
    %c0_i32 = arith.constant 0 : i32
    %c0_i32_0 = arith.constant 0 : i32
    return %arg0, %c0_i32 : i32, i32
  }
  func.func @transform_1(%arg0: i32) -> (i32, i32) {
    %c0_i32 = arith.constant 0 : i32
    %c0_i32_0 = arith.constant 0 : i32
    %c0_i32_1 = arith.constant 0 : i32
    return %c0_i32, %c0_i32_0 : i32, i32
  }
  func.func @transform_2(%arg0: i32) -> (i32, i32) {
    %c0_i32 = arith.constant 0 : i32
    %c0_i32_0 = arith.constant 0 : i32
    %c0_i32_1 = arith.constant 0 : i32
    return %c0_i32, %c0_i32_0 : i32, i32
  }
  func.func @transform_3(%arg0: i32) -> (i32, i32) {
    %c0_i32 = arith.constant 0 : i32
    %c0_i32_0 = arith.constant 0 : i32
    return %arg0, %c0_i32 : i32, i32
  }
}

</mosaic_0001>

<llo_original>
// kernel: tpu_custom_call.1
$region0: #{tpu_custom_call.1}
  #allocation0 [shape = 'u32[]', space=smem, size = 0x4, offset = 0x4, fixed_abs, tag = 'smem constant byte address 0x4 - core index']
  #allocation1 [shape = 'u32[144,128]{1,0:T(1,128)}', space=vmem, size = 0x12000, scoped, tag = 'internal scratch']
  %s0 = inlined_call_operand.hbm [shape: f32[20,32], index: 0, kind: input, shape index: {}]
  %s1 = inlined_call_operand.hbm [shape: f32[32,256], index: 1, kind: input, shape index: {}]
  %s2 = inlined_call_operand.vmem [shape: f32[1,256], index: 2, kind: input, shape index: {}]
  %s3 = inlined_call_operand.hbm [shape: f32[20,128], index: 3, kind: output, shape index: {}]
  %s4 = sld [smem:[#allocation0]]
  $region53: #{tpu_custom_call.1} parent=0
    _
  %s6 = ssub.s32 1, %s4
  %s7 = scalar_select 0, %s6, %s4
  $region1: #{tpu_custom_call.1} parent=0
    #allocation2 [shape = 'u8[8192]{0}', space=vmem, size = 0x2000, scoped, tag = 'input window, operand 0']
    #allocation3 [shape = 's32[2]{0}', space=sflag, size = 0x8, scoped, tag = 'scoped memory for tpu_custom_call.1']
    #allocation4 [shape = 's32[2]{0}', space=sflag, size = 0x8, scoped, tag = 'scoped memory for tpu_custom_call.1']
    #allocation5 [shape = 'u8[32768]{0}', space=vmem, size = 0x8000, scoped, tag = 'input window, operand 1, single buffered']
    #allocation6 [shape = 's32[1]{0}', space=sflag, size = 0x4, scoped, tag = 'scoped memory for tpu_custom_call.1']
    #allocation7 [shape = 'u8[8192]{0}', space=vmem, size = 0x2000, scoped, tag = 'output window, operand 0']
    %8 = vsyncpa [#allocation3], 0
    %s9 = scalar_lea.sflag [#allocation3], 1
    %10 = vsyncpa %s9, 0
    %11 = vsyncpa [#allocation6], 0
    %12 = vsyncpa [#allocation4], 0
    %s13 = scalar_lea.sflag [#allocation4], 1
    %14 = vsyncpa %s13, 0
    loop: start=0, step=1, limit=5
    $region2: #{tpu_custom_call.1} parent=1 // loop_pre_header
      _
    $region3: #{tpu_custom_call.1} parent=1 // loop_header
      %s16 = sphi 0, %s20
      %p17 = scmp.ge.s32.totalorder %s16, 5
      %s26 = sphi 0, %s28
      %s29 = sphi 0, %s26
      %s30 = sphi 0, %s29
      %s46 = sphi 0, %s30
      %s50 = sphi 0, %s50
      %s52 = sphi 0, %s50
      %s53 = sphi 0, %s52
      %s67 = sphi 0, %s53
      %s71 = sphi 0, %s71
      %s73 = sphi 0, %s71
      %s74 = sphi 0, %s73
      %s88 = sphi 0, %s74
      %s94 = sphi 0, %s96
      %s97 = sphi 0, %s94
      %s98 = sphi 0, %s97
      %s114 = sphi 0, %s98
    $region4: #{tpu_custom_call.1} parent=1 // loop_header_branch
      %19 = sbr.rel (%p17) target = $region8
    $region5: #{tpu_custom_call.1} parent=1 // loop_body
      %s21 = ssub.s32 %s16, 1
      %s22 = ssub.s32 %s16, 2
      %s23 = sadd.s32 %s16, 1
      %s24 = ssub.s32 %s16, %s23
      %p25 = scmp.eq.s32.totalorder %s24, 0
      %s27 = sadd.s32 %s26, 1
      %s28 = scalar_select %p25, %s26, %s27
      %p31 = pneg %p25
      %p32 = scmp.eq.s32.totalorder %s16, 2
      %p33 = por %p31, %p32
      %p34 = scmp.ne.s32.totalorder %s26, %s29
      %p35 = scmp.eq.s32.totalorder %s16, 0
      %p36 = por %p34, %p35
      %p37 = scmp.ne.s32.totalorder %s26, %s29
      %p38 = scmp.eq.s32.totalorder %s21, 2
      %p39 = por %p37, %p38
      %p40 = scmp.ne.s32.totalorder %s29, %s30
      %p41 = scmp.eq.s32.totalorder %s21, 0
      %p42 = por %p40, %p41
      %p43 = scmp.ne.s32.totalorder %s29, %s30
      %p44 = scmp.eq.s32.totalorder %s22, 2
      %p45 = por %p43, %p44
      %p47 = scmp.ne.s32.totalorder %s30, %s46
      %p48 = scmp.eq.s32.totalorder %s22, 0
      %p49 = por %p47, %p48
      %s51 = sadd.s32 %s50, 1
      %p54 = scmp.eq.s32.totalorder %s16, 2
      %p55 = scmp.ne.s32.totalorder %s50, %s52
      %p56 = scmp.eq.s32.totalorder %s16, 0
      %p57 = por %p55, %p56
      %p58 = scmp.ne.s32.totalorder %s50, %s52
      %p59 = scmp.eq.s32.totalorder %s21, 2
      %p60 = por %p58, %p59
      %p61 = scmp.ne.s32.totalorder %s52, %s53
      %p62 = scmp.eq.s32.totalorder %s21, 0
      %p63 = por %p61, %p62
      %p64 = scmp.ne.s32.totalorder %s52, %s53
      %p65 = scmp.eq.s32.totalorder %s22, 2
      %p66 = por %p64, %p65
      %p68 = scmp.ne.s32.totalorder %s53, %s67
      %p69 = scmp.eq.s32.totalorder %s22, 0
      %p70 = por %p68, %p69
      %s72 = sadd.s32 %s71, 1
      %p75 = scmp.eq.s32.totalorder %s16, 2
      %p76 = scmp.ne.s32.totalorder %s71, %s73
      %p77 = scmp.eq.s32.totalorder %s16, 0
      %p78 = por %p76, %p77
      %p79 = scmp.ne.s32.totalorder %s71, %s73
      %p80 = scmp.eq.s32.totalorder %s21, 2
      %p81 = por %p79, %p80
      %p82 = scmp.ne.s32.totalorder %s73, %s74
      %p83 = scmp.eq.s32.totalorder %s21, 0
      %p84 = por %p82, %p83
      %p85 = scmp.ne.s32.totalorder %s73, %s74
      %p86 = scmp.eq.s32.totalorder %s22, 2
      %p87 = por %p85, %p86
      %p89 = scmp.ne.s32.totalorder %s74, %s88
      %p90 = scmp.eq.s32.totalorder %s22, 0
      %p91 = por %p89, %p90
      %s92 = ssub.s32 %s16, %s23
      %p93 = scmp.eq.s32.totalorder %s92, 0
      %s95 = sadd.s32 %s94, 1
      %s96 = scalar_select %p93, %s94, %s95
      %p99 = pneg %p93
      %p100 = scmp.eq.s32.totalorder %s16, 2
      %p101 = por %p99, %p100
      %p102 = scmp.ne.s32.totalorder %s94, %s97
      %p103 = scmp.eq.s32.totalorder %s16, 0
      %p104 = por %p102, %p103
      %p105 = scmp.ne.s32.totalorder %s94, %s97
      %p106 = scmp.eq.s32.totalorder %s21, 2
      %p107 = por %p105, %p106
      %p108 = scmp.ne.s32.totalorder %s97, %s98
      %p109 = scmp.eq.s32.totalorder %s21, 0
      %p110 = por %p108, %p109
      %p111 = scmp.ne.s32.totalorder %s97, %s98
      %p112 = scmp.eq.s32.totalorder %s22, 2
      %p113 = por %p111, %p112
      %p115 = scmp.ne.s32.totalorder %s98, %s114
      %p116 = scmp.eq.s32.totalorder %s22, 0
      %p117 = por %p115, %p116
      %p118 = scmp.le.s32.totalorder 1, %s16
      %p119 = scmp.lt.s32.totalorder %s16, 4
      %p120 = pnand %p118, %p119
      %p121 = pneg %p120
      // Predicated region
      $region9: #{tpu_custom_call.1} parent=5 // pred_check
        _
      $region10: #{tpu_custom_call.1} parent=5 // pred_check_branch
        %123 = sbr.rel (%p120) target = $region12
      $region11: #{tpu_custom_call.1} parent=5 // pred_region
        %s124 = ssub.s32 %s16, 1
        // Predicated region
        $region13: #{tpu_custom_call.1} parent=11 // pred_check
          %p125 = pneg %p63
        $region14: #{tpu_custom_call.1} parent=11 // pred_check_branch
          %127 = sbr.rel (%p125) target = $region16
        $region15: #{tpu_custom_call.1} parent=11 // pred_region
          %s129 = ssub.s32 1024, 1024
          %130 = vsyncadd [#allocation6], %s129
          %s131 = sshll.u32 [#allocation5], 4
          %s132 = int_to_ptr.vmem [resolvable:$true] %s131
          %137 = dma.hbm_to_vmem [thread:$0]  %s1, 1024, %s132, [#allocation6], 256, 256, 16
        $region16: #{tpu_custom_call.1} parent=11 // pred_fallthru
          _
        // Predicated region
        $region17: #{tpu_custom_call.1} parent=11 // pred_check
          %p138 = pneg %p84
        $region18: #{tpu_custom_call.1} parent=11 // pred_check_branch
          %140 = sbr.rel (%p138) target = $region20
        $region19: #{tpu_custom_call.1} parent=11 // pred_region
          _
        $region20: #{tpu_custom_call.1} parent=11 // pred_fallthru
          _
      $region12: #{tpu_custom_call.1} parent=5 // pred_fallthru
        _
      %p141 = scmp.lt.s32.totalorder %s16, 3
      // Predicated region
      $region21: #{tpu_custom_call.1} parent=5 // pred_check
        %p142 = pneg %p141
      $region22: #{tpu_custom_call.1} parent=5 // pred_check_branch
        %144 = sbr.rel (%p142) target = $region24
      $region23: #{tpu_custom_call.1} parent=5 // pred_region
        // Predicated region
        $region25: #{tpu_custom_call.1} parent=23 // pred_check
          %p145 = pneg %p36
        $region26: #{tpu_custom_call.1} parent=23 // pred_check_branch
          %147 = sbr.rel (%p145) target = $region28
        $region27: #{tpu_custom_call.1} parent=23 // pred_region
          %s148 = sand.u32 %s26, 1
          %s149 = scalar_lea.sflag [#allocation3], %s148
          %s150 = sand.u32 %s26, 1
          %s151 = smul.addr %s150, 8
          %s152 = scalar_lea.vmem [#allocation2], %s151
          %s154 = ssub.s32 128, 128
          %155 = vsyncadd %s149, %s154
          %s156 = smul.addr %s16, 128
          %s157 = scalar_lea.hbm %s0, %s156
          %s159 = sshll.u32 %s152, 4
          %s160 = int_to_ptr.vmem [resolvable:$true] %s159
          %162 = dma.hbm_to_vmem [thread:$0]  %s157, 128, %s160, %s149
        $region28: #{tpu_custom_call.1} parent=23 // pred_fallthru
          _
      $region24: #{tpu_custom_call.1} parent=5 // pred_fallthru
        _
      %p163 = scmp.le.s32.totalorder 1, %s16
      %p164 = scmp.lt.s32.totalorder %s16, 4
      %p165 = pnand %p163, %p164
      %p166 = pneg %p165
      // Predicated region
      $region29: #{tpu_custom_call.1} parent=5 // pred_check
        _
      $region30: #{tpu_custom_call.1} parent=5 // pred_check_branch
        %168 = sbr.rel (%p165) target = $region32
      $region31: #{tpu_custom_call.1} parent=5 // pred_region
        %s169 = ssub.s32 %s16, 1
        %s170 = sand.u32 %s29, 1
        %s171 = scalar_lea.sflag [#allocation3], %s170
        %s172 = sand.u32 %s29, 1
        %s173 = smul.addr %s172, 8
        %s174 = scalar_lea.vmem [#allocation2], %s173
        // Predicated region
        $region33: #{tpu_custom_call.1} parent=31 // pred_check
          %p175 = pneg %p42
        $region34: #{tpu_custom_call.1} parent=31 // pred_check_branch
          %177 = sbr.rel (%p175) target = $region36
        $region35: #{tpu_custom_call.1} parent=31 // pred_region
          %178 = dma.done %s171, 128
        $region36: #{tpu_custom_call.1} parent=31 // pred_fallthru
          _
        // Predicated region
        $region37: #{tpu_custom_call.1} parent=31 // pred_check
          %p179 = pneg %p63
        $region38: #{tpu_custom_call.1} parent=31 // pred_check_branch
          %181 = sbr.rel (%p179) target = $region40
        $region39: #{tpu_custom_call.1} parent=31 // pred_region
          %182 = dma.done [#allocation6], 1024
        $region40: #{tpu_custom_call.1} parent=31 // pred_fallthru
          _
        %s183 = sand.u32 %s29, 1
        %s184 = scalar_lea.sflag [#allocation3], %s183
        %s185 = sand.u32 %s29, 1
        %s186 = smul.addr %s185, 8
        %s187 = scalar_lea.vmem [#allocation2], %s186
        %p188 = pneg %p42
        %p189 = pneg %p39
        %p190 = pneg %p63
        %p191 = pneg %p60
        %p192 = pneg %p84
        %p193 = pneg %p81
        %p194 = pneg %p110
        %p195 = pneg %p107
        %s196 = sand.u32 %s97, 1
        %s197 = scalar_lea.sflag [#allocation4], %s196
        %s198 = sand.u32 %s97, 1
        %s199 = smul.addr %s198, 8
        %s200 = scalar_lea.vmem [#allocation7], %s199
        %v201 = vld [vmem:[%s174] sm:$0xff]
        %v202 = vld [vmem:[#allocation5] sm:$0xff]
        %v203 = vld [vmem:[#allocation5 + $0x8] sm:$0xff]
        %v204 = vld [vmem:[#allocation5 + $0x10] sm:$0xff]
        %v205 = vld [vmem:[#allocation5 + $0x18] sm:$0xff]
        %v206 = vld [vmem:[#allocation5 + $0x20] sm:$0xff]
        %v207 = vld [vmem:[#allocation5 + $0x28] sm:$0xff]
        %v208 = vld [vmem:[#allocation5 + $0x30] sm:$0xff]
        %v209 = vld [vmem:[#allocation5 + $0x38] sm:$0xff]
        %v210 = vld [vmem:[%s2] sm:$0x3]
        %v212 = vlaneseq
        %v213 = vshrl.u32 %v212, 7
        %v214 = vsub.s32 0, %v213
        %v215 = vrot.slane %v210, %v214
        %v216 = vlaneseq
        %v217 = vshrl.u32 %v216, 7
        %v218 = vsub.s32 1, %v217
        %v219 = vrot.slane %v210, %v218
        %vm222 = vcmask 261120
        %v224 = vsel %vm222, %v201, 0
        %226 = vmatprep.subr.mxu0 0.0
        %227 = vmatpush1.msra.mxu0 0.0
        %228 = vmatprep.subr.mxu0 0.0
        %229 = vmatpush1.msra.mxu0 0.0
        %230 = vmatprep.subr.mxu0 0.0
        %231 = vmatpush1.msra.mxu0 0.0
        %232 = vmatprep.subr.mxu0 0.0
        %233 = vmatpush1.msra.mxu0 0.0
        %234 = vmatprep.subr.mxu0 0.0
        %235 = vmatpush1.msra.mxu0 0.0
        %236 = vmatprep.subr.mxu0 0.0
        %237 = vmatpush1.msra.mxu0 0.0
        %238 = vmatprep.subr.mxu0 0.0
        %239 = vmatpush1.msra.mxu0 0.0
        %240 = vmatprep.subr.mxu0 0.0
        %241 = vmatpush1.msra.mxu0 0.0
        %242 = vmatprep.subr.mxu0 0.0
        %243 = vmatpush1.msra.mxu0 0.0
        %244 = vmatprep.subr.mxu0 0.0
        %245 = vmatpush1.msra.mxu0 0.0
        %246 = vmatprep.subr.mxu0 0.0
        %247 = vmatpush1.msra.mxu0 0.0
        %248 = vmatprep.subr.mxu0 0.0
        %249 = vmatpush1.msra.mxu0 0.0
        %250 = vmatprep.subr.mxu0 %v209
        %251 = vmatpush1.msra.mxu0 %v208
        %252 = vmatprep.subr.mxu0 %v207
        %253 = vmatpush1.msra.mxu0 %v206
        %254 = vmatprep.subr.mxu0 %v205
        %255 = vmatpush1.msra.mxu0 %v204
        %256 = vmatprep.subr.mxu0 %v203
        %257 = vmatpush1.msra.mxu0 %v202
        %258 = vmatprep.subr.mxu0 0.0
        %259 = vmatpush2.msra.mxu0 0.0
        %260 = vmatprep.subr.mxu0 0.0
        %261 = vmatpush2.msra.mxu0 0.0
        %262 = vmatprep.subr.mxu0 0.0
        %263 = vmatpush2.msra.mxu0 0.0
        %264 = vmatprep.subr.mxu0 0.0
        %265 = vmatpush2.msra.mxu0 0.0
        %266 = vmatprep.subr.mxu0 0.0
        %267 = vmatpush2.msra.mxu0 0.0
        %268 = vmatprep.subr.mxu0 0.0
        %269 = vmatpush2.msra.mxu0 0.0
        %270 = vmatprep.subr.mxu0 0.0
        %271 = vmatpush2.msra.mxu0 0.0
        %272 = vmatprep.subr.mxu0 0.0
        %273 = vmatpush2.msra.mxu0 0.0
        %274 = vmatprep.subr.mxu0 0.0
        %275 = vmatpush2.msra.mxu0 0.0
        %276 = vmatprep.subr.mxu0 0.0
        %277 = vmatpush2.msra.mxu0 0.0
        %278 = vmatprep.subr.mxu0 0.0
        %279 = vmatpush2.msra.mxu0 0.0
        %280 = vmatprep.subr.mxu0 0.0
        %281 = vmatpush2.msra.mxu0 0.0
        %282 = vmatprep.subr.mxu0 0.0
        %283 = vmatpush2.msra.mxu0 0.0
        %284 = vmatprep.subr.mxu0 0.0
        %285 = vmatpush2.msra.mxu0 0.0
        %286 = vmatprep.subr.mxu0 0.0
        %287 = vmatpush2.msra.mxu0 0.0
        %288 = vmatprep.subr.mxu0 0.0
        %289 = vmatpush2.msra.mxu0 0.0
        %290 = vmatprep.mubr.f32.mxu0 0.0
        %291 = vmatmul.mubr.f32.gmra.mxu0 %v224
        %v292 = vpop.f32.mrf.mxu0
        %v293 = vadd.f32 %v215, %v292
        %v294 = vpop.f32.mrf.mxu0
        %v295 = vadd.f32 %v219, %v294
        %296 = vdwg.mxu0
        %v297 = vand.u32 2147483647, %v293
        %vm298 = vcmp.le.f32.partialorder %v297, 0.7853982
        %vm299 = vcmp.lt.s32.totalorder %v293, 0
        %v300 = vand.u32 %v293, 2139095040
        %v301 = vshrl.u32 %v300, 23
        %v302 = vsub.s32 %v301, 127
        %v303 = vand.u32 2147483647, %v293
        %v304 = vand.u32 %v303, 8388607
        %v305 = vor.u32 %v304, 8388608
        %v306 = vsub.s32 0, %v305
        %v307 = vadd.s32 %v302, 1
        %vm308 = vcmp.gt.s32.totalorder %v307, 0
        %v309 = vsel %vm308, %v307, 0
        %v310 = vshrl.u32 %v309, 5
        %v311 = vand.u32 %v309, 31
        %v312 = vsub.s32 32, %v311
        %v313 = vshrl.u32 683565275, %v312
        %v314 = vshll.u32 683565275, %v311
        %v315 = vshrl.u32 2475754826, %v312
        %v316 = vor.u32 %v314, %v315
        %v317 = vshll.u32 2475754826, %v311
        %v318 = vshrl.u32 2131351028, %v312
        %v319 = vor.u32 %v317, %v318
        %v320 = vshll.u32 2131351028, %v311
        %v321 = vshrl.u32 2102212464, %v312
        %v322 = vor.u32 %v320, %v321
        %v323 = vshll.u32 2102212464, %v311
        %v324 = vshrl.u32 920167782, %v312
        %v325 = vor.u32 %v323, %v324
        %v326 = vshll.u32 920167782, %v311
        %v327 = vshrl.u32 1326507024, %v312
        %v328 = vor.u32 %v326, %v327
        %vm329 = vcmp.lt.s32.totalorder %v310, 1
        %vm330 = vcmp.lt.s32.totalorder %v310, 2
        %vm331 = vcmp.lt.s32.totalorder %v310, 3
        %vm332 = vcmp.lt.s32.totalorder %v310, 4
        %v333 = vsel %vm329, %v313, %v316
        %v334 = vsel %vm332, %v322, 2102212464
        %v335 = vsel %vm331, %v319, %v334
        %v336 = vsel %vm330, %v333, %v335
        %v337 = vsel %vm329, %v316, %v319
        %v338 = vsel %vm332, %v325, 920167782
        %v339 = vsel %vm331, %v322, %v338
        %v340 = vsel %vm330, %v337, %v339
        %v341 = vsel %vm329, %v319, %v322
        %v342 = vsel %vm332, %v328, 1326507024
        %v343 = vsel %vm331, %v325, %v342
        %v344 = vsel %vm330, %v341, %v343
        %v345 = vshll.u32 %v305, 8
        %v346 = vmul.u32.u64.compose %v345, %v344
        %v347 = vextract.low.u32 %v346
        %v348 = vextract.high.u32 %v346
        %v349 = vmul.u32.u64.compose %v345, %v340
        %v350 = vextract.low.u32 %v349
        %v351 = vextract.high.u32 %v349
        %v352 = vmul.u32 %v345, %v336
        %v353 = vadd.s32 %v348, %v350
        %vm354 = vc.u32 %v348, %v350
        %v355 = vadd.s32 %v351, 1
        %v356 = vsel %vm354, %v355, %v351
        %v357 = vadd.s32 %v352, %v356
        %v358 = vadd.s32 %v357, 536870912
        %v359 = vshrl.u32 %v358, 30
        %v360 = vshll.u32 %v359, 30
        %v361 = vsub.s32 %v357, %v360
        %vm362 = vcmp.lt.s32.totalorder %v361, 0
        %v363 = vsub.s32 0, %v361
        %v364 = vsel %vm362, %v363, %v361
        %v365 = vclz %v364
        %v366 = vsub.s32 %v365, 2
        %vm367 = vcmp.gt.s32.totalorder 0, %v366
        %v368 = vsel %vm367, 0, %v366
        %v369 = vsub.s32 32, %v368
        %v370 = vshll.u32 %v361, %v368
        %v371 = vshrl.u32 %v353, %v369
        %v372 = vor.u32 %v370, %v371
        %v373 = vsub.s32 4294967266, %v368
        %v374 = vadd.s32 %v373, 127
        %v375 = vshll.u32 %v374, 23
        %v376 = vor.u32 4788187, %v375
        %v377 = vand.u32 2147483647, %v376
        %v379 = vcvt.s32.f32 %v372
        %v380 = vmul.f32 %v379, %v377
        %v381 = vxor.u32 %v380, 2147483648
        %v382 = vsel %vm299, %v381, %v380
        %v383 = vsub.s32 4, %v359
        %v384 = vsel %vm299, %v383, %v359
        %v385 = vsel %vm298, %v293, %v382
        %v386 = vsel %vm298, 0, %v384
        %v387 = vcosq.f32.pop %v385
        %v388 = vsinq.f32.pop %v385
        %vm389 = vweird.f32 %v293
        %v390 = vadd.s32 %v386, 3
        %v391 = vand.u32 %v390, 3
        %vm392 = vcmp.lt.s32.totalorder %v391, 2
        %vm393 = vcmp.eq.s32.totalorder %v391, 0
        %v394 = vxor.u32 %v388, 2147483648
        %v395 = vsel %vm393, %v387, %v394
        %vm396 = vcmp.eq.s32.totalorder %v391, 2
        %v397 = vxor.u32 %v387, 2147483648
        %v398 = vsel %vm396, %v397, %v388
        %v399 = vsel %vm392, %v395, %v398
        %v400 = vsel %vm389, nan, %v399
        %v401 = vadd.f32 %v400, %v295
        %v402 = vmax.f32 %v401, 0.0
        %403 = vst [vmem:[%s200] sm:$0xff] %v402
        %s404 = sand.u32 %s97, 1
        %s405 = scalar_lea.sflag [#allocation4], %s404
        %s406 = sand.u32 %s97, 1
        %s407 = smul.addr %s406, 8
        %s408 = scalar_lea.vmem [#allocation7], %s407
        // Predicated region
        $region41: #{tpu_custom_call.1} parent=31 // pred_check
          %p409 = pneg %p107
        $region42: #{tpu_custom_call.1} parent=31 // pred_check_branch
          %411 = sbr.rel (%p409) target = $region44
        $region43: #{tpu_custom_call.1} parent=31 // pred_region
          %s413 = ssub.s32 128, 128
          %414 = vsyncadd %s405, %s413
          %s415 = smul.addr %s21, 128
          %s416 = scalar_lea.hbm %s3, %s415
          %s418 = sshll.u32 %s408, 4
          %s419 = int_to_ptr.vmem [resolvable:$true] %s418
          %421 = dma.vmem_to_hbm [thread:$0]  %s419, 128, %s416, %s405
        $region44: #{tpu_custom_call.1} parent=31 // pred_fallthru
          _
      $region32: #{tpu_custom_call.1} parent=5 // pred_fallthru
        _
      %p422 = scmp.le.s32.totalorder 2, %s16
      // Predicated region
      $region45: #{tpu_custom_call.1} parent=5 // pred_check
        %p423 = pneg %p422
      $region46: #{tpu_custom_call.1} parent=5 // pred_check_branch
        %425 = sbr.rel (%p423) target = $region48
      $region47: #{tpu_custom_call.1} parent=5 // pred_region
        %s426 = ssub.s32 %s16, 2
        // Predicated region
        $region49: #{tpu_custom_call.1} parent=47 // pred_check
          %p427 = pneg %p113
        $region50: #{tpu_custom_call.1} parent=47 // pred_check_branch
          %429 = sbr.rel (%p427) target = $region52
        $region51: #{tpu_custom_call.1} parent=47 // pred_region
          %s430 = sand.u32 %s98, 1
          %s431 = scalar_lea.sflag [#allocation4], %s430
          %s432 = sand.u32 %s98, 1
          %s433 = smul.addr %s432, 8
          %s434 = scalar_lea.vmem [#allocation7], %s433
          %435 = dma.done %s431, 128
        $region52: #{tpu_custom_call.1} parent=47 // pred_fallthru
          _
      $region48: #{tpu_custom_call.1} parent=5 // pred_fallthru
        _
    $region6: #{tpu_custom_call.1} parent=1 // loop_footer
      %s20 = sadd.s32 1, %s16
    $region7: #{tpu_custom_call.1} parent=1 // loop_footer_branch
      %15 = sbr.rel target = $region3
    $region8: #{tpu_custom_call.1} parent=1 // loop_exit
      _
    %436 = vsyncpa [#allocation3], 1
    %s437 = scalar_lea.sflag [#allocation3], 1
    %438 = vsyncpa %s437, 1
    %439 = vsyncpa [#allocation6], 1
    %440 = vsyncpa [#allocation4], 1
    %s441 = scalar_lea.sflag [#allocation4], 1
    %442 = vsyncpa %s441, 1

// kernel: tpu_custom_call.1
$region0: #{tpu_custom_call.1}
  #allocation0 [shape = 'u32[]', space=smem, size = 0x4, offset = 0x4, fixed_abs, tag = 'smem constant byte address 0x4 - core index']
  #allocation1 [shape = 'u32[144,128]{1,0:T(1,128)}', space=vmem, size = 0x12000, scoped, tag = 'internal scratch']
  %s0 = inlined_call_operand.hbm [shape: f32[20,32], index: 0, kind: input, shape index: {}]
  %s1 = inlined_call_operand.hbm [shape: f32[32,256], index: 1, kind: input, shape index: {}]
  %s2 = inlined_call_operand.vmem [shape: f32[1,256], index: 2, kind: input, shape index: {}]
  %s3 = inlined_call_operand.hbm [shape: f32[20,128], index: 3, kind: output, shape index: {}]
  %s4 = sld [smem:[#allocation0]]
  $region53: #{tpu_custom_call.1} parent=0
    _
  %s6 = ssub.s32 1, %s4
  %s7 = scalar_select 0, %s6, %s4
  $region1: #{tpu_custom_call.1} parent=0
    #allocation2 [shape = 'u8[8192]{0}', space=vmem, size = 0x2000, scoped, tag = 'input window, operand 0']
    #allocation3 [shape = 's32[2]{0}', space=sflag, size = 0x8, scoped, tag = 'scoped memory for tpu_custom_call.1']
    #allocation4 [shape = 's32[2]{0}', space=sflag, size = 0x8, scoped, tag = 'scoped memory for tpu_custom_call.1']
    #allocation5 [shape = 'u8[32768]{0}', space=vmem, size = 0x8000, scoped, tag = 'input window, operand 1, single buffered']
    #allocation6 [shape = 's32[1]{0}', space=sflag, size = 0x4, scoped, tag = 'scoped memory for tpu_custom_call.1']
    #allocation7 [shape = 'u8[8192]{0}', space=vmem, size = 0x2000, scoped, tag = 'output window, operand 0']
    %8 = vsyncpa [#allocation3], 0
    %s9 = scalar_lea.sflag [#allocation3], 1
    %10 = vsyncpa %s9, 0
    %11 = vsyncpa [#allocation6], 0
    %12 = vsyncpa [#allocation4], 0
    %s13 = scalar_lea.sflag [#allocation4], 1
    %14 = vsyncpa %s13, 0
    loop: start=0, step=1, limit=5
    $region2: #{tpu_custom_call.1} parent=1 // loop_pre_header
      _
    $region3: #{tpu_custom_call.1} parent=1 // loop_header
      %s16 = sphi 0, %s20
      %p17 = scmp.ge.s32.totalorder %s16, 5
      %s26 = sphi 0, %s28
      %s29 = sphi 0, %s26
      %s30 = sphi 0, %s29
      %s46 = sphi 0, %s30
      %s50 = sphi 0, %s50
      %s52 = sphi 0, %s50
      %s53 = sphi 0, %s52
      %s67 = sphi 0, %s53
      %s71 = sphi 0, %s71
      %s73 = sphi 0, %s71
      %s74 = sphi 0, %s73
      %s88 = sphi 0, %s74
      %s94 = sphi 0, %s96
      %s97 = sphi 0, %s94
      %s98 = sphi 0, %s97
      %s114 = sphi 0, %s98
    $region4: #{tpu_custom_call.1} parent=1 // loop_header_branch
      %19 = sbr.rel (%p17) target = $region8
    $region5: #{tpu_custom_call.1} parent=1 // loop_body
      %s21 = ssub.s32 %s16, 1
      %s22 = ssub.s32 %s16, 2
      %s23 = sadd.s32 %s16, 1
      %s24 = ssub.s32 %s16, %s23
      %p25 = scmp.eq.s32.totalorder %s24, 0
      %s27 = sadd.s32 %s26, 1
      %s28 = scalar_select %p25, %s26, %s27
      %p31 = pneg %p25
      %p32 = scmp.eq.s32.totalorder %s16, 2
      %p33 = por %p31, %p32
      %p34 = scmp.ne.s32.totalorder %s26, %s29
      %p35 = scmp.eq.s32.totalorder %s16, 0
      %p36 = por %p34, %p35
      %p37 = scmp.ne.s32.totalorder %s26, %s29
      %p38 = scmp.eq.s32.totalorder %s21, 2
      %p39 = por %p37, %p38
      %p40 = scmp.ne.s32.totalorder %s29, %s30
      %p41 = scmp.eq.s32.totalorder %s21, 0
      %p42 = por %p40, %p41
      %p43 = scmp.ne.s32.totalorder %s29, %s30
      %p44 = scmp.eq.s32.totalorder %s22, 2
      %p45 = por %p43, %p44
      %p47 = scmp.ne.s32.totalorder %s30, %s46
      %p48 = scmp.eq.s32.totalorder %s22, 0
      %p49 = por %p47, %p48
      %s51 = sadd.s32 %s50, 1
      %p54 = scmp.eq.s32.totalorder %s16, 2
      %p55 = scmp.ne.s32.totalorder %s50, %s52
      %p56 = scmp.eq.s32.totalorder %s16, 0
      %p57 = por %p55, %p56
      %p58 = scmp.ne.s32.totalorder %s50, %s52
      %p59 = scmp.eq.s32.totalorder %s21, 2
      %p60 = por %p58, %p59
      %p61 = scmp.ne.s32.totalorder %s52, %s53
      %p62 = scmp.eq.s32.totalorder %s21, 0
      %p63 = por %p61, %p62
      %p64 = scmp.ne.s32.totalorder %s52, %s53
      %p65 = scmp.eq.s32.totalorder %s22, 2
      %p66 = por %p64, %p65
      %p68 = scmp.ne.s32.totalorder %s53, %s67
      %p69 = scmp.eq.s32.totalorder %s22, 0
      %p70 = por %p68, %p69
      %s72 = sadd.s32 %s71, 1
      %p75 = scmp.eq.s32.totalorder %s16, 2
      %p76 = scmp.ne.s32.totalorder %s71, %s73
      %p77 = scmp.eq.s32.totalorder %s16, 0
      %p78 = por %p76, %p77
      %p79 = scmp.ne.s32.totalorder %s71, %s73
      %p80 = scmp.eq.s32.totalorder %s21, 2
      %p81 = por %p79, %p80
      %p82 = scmp.ne.s32.totalorder %s73, %s74
      %p83 = scmp.eq.s32.totalorder %s21, 0
      %p84 = por %p82, %p83
      %p85 = scmp.ne.s32.totalorder %s73, %s74
      %p86 = scmp.eq.s32.totalorder %s22, 2
      %p87 = por %p85, %p86
      %p89 = scmp.ne.s32.totalorder %s74, %s88
      %p90 = scmp.eq.s32.totalorder %s22, 0
      %p91 = por %p89, %p90
      %s92 = ssub.s32 %s16, %s23
      %p93 = scmp.eq.s32.totalorder %s92, 0
      %s95 = sadd.s32 %s94, 1
      %s96 = scalar_select %p93, %s94, %s95
      %p99 = pneg %p93
      %p100 = scmp.eq.s32.totalorder %s16, 2
      %p101 = por %p99, %p100
      %p102 = scmp.ne.s32.totalorder %s94, %s97
      %p103 = scmp.eq.s32.totalorder %s16, 0
      %p104 = por %p102, %p103
      %p105 = scmp.ne.s32.totalorder %s94, %s97
      %p106 = scmp.eq.s32.totalorder %s21, 2
      %p107 = por %p105, %p106
      %p108 = scmp.ne.s32.totalorder %s97, %s98
      %p109 = scmp.eq.s32.totalorder %s21, 0
      %p110 = por %p108, %p109
      %p111 = scmp.ne.s32.totalorder %s97, %s98
      %p112 = scmp.eq.s32.totalorder %s22, 2
      %p113 = por %p111, %p112
      %p115 = scmp.ne.s32.totalorder %s98, %s114
      %p116 = scmp.eq.s32.totalorder %s22, 0
      %p117 = por %p115, %p116
      %p118 = scmp.le.s32.totalorder 1, %s16
      %p119 = scmp.lt.s32.totalorder %s16, 4
      %p120 = pnand %p118, %p119
      %p121 = pneg %p120
      // Predicated region
      $region9: #{tpu_custom_call.1} parent=5 // pred_check
        _
      $region10: #{tpu_custom_call.1} parent=5 // pred_check_branch
        %123 = sbr.rel (%p120) target = $region12
      $region11: #{tpu_custom_call.1} parent=5 // pred_region
        %s124 = ssub.s32 %s16, 1
        // Predicated region
        $region13: #{tpu_custom_call.1} parent=11 // pred_check
          %p125 = pneg %p63
        $region14: #{tpu_custom_call.1} parent=11 // pred_check_branch
          %127 = sbr.rel (%p125) target = $region16
        $region15: #{tpu_custom_call.1} parent=11 // pred_region
          %s129 = ssub.s32 1024, 1024
          %130 = vsyncadd [#allocation6], %s129
          %s131 = sshll.u32 [#allocation5], 4
          %s132 = int_to_ptr.vmem [resolvable:$true] %s131
          %137 = dma.hbm_to_vmem [thread:$0]  %s1, 1024, %s132, [#allocation6], 256, 256, 16
        $region16: #{tpu_custom_call.1} parent=11 // pred_fallthru
          _
        // Predicated region
        $region17: #{tpu_custom_call.1} parent=11 // pred_check
          %p138 = pneg %p84
        $region18: #{tpu_custom_call.1} parent=11 // pred_check_branch
          %140 = sbr.rel (%p138) target = $region20
        $region19: #{tpu_custom_call.1} parent=11 // pred_region
          _
        $region20: #{tpu_custom_call.1} parent=11 // pred_fallthru
          _
      $region12: #{tpu_custom_call.1} parent=5 // pred_fallthru
        _
      %p141 = scmp.lt.s32.totalorder %s16, 3
      // Predicated region
      $region21: #{tpu_custom_call.1} parent=5 // pred_check
        %p142 = pneg %p141
      $region22: #{tpu_custom_call.1} parent=5 // pred_check_branch
        %144 = sbr.rel (%p142) target = $region24
      $region23: #{tpu_custom_call.1} parent=5 // pred_region
        // Predicated region
        $region25: #{tpu_custom_call.1} parent=23 // pred_check
          %p145 = pneg %p36
        $region26: #{tpu_custom_call.1} parent=23 // pred_check_branch
          %147 = sbr.rel (%p145) target = $region28
        $region27: #{tpu_custom_call.1} parent=23 // pred_region
          %s148 = sand.u32 %s26, 1
          %s149 = scalar_lea.sflag [#allocation3], %s148
          %s150 = sand.u32 %s26, 1
          %s151 = smul.addr %s150, 8
          %s152 = scalar_lea.vmem [#allocation2], %s151
          %s154 = ssub.s32 128, 128
          %155 = vsyncadd %s149, %s154
          %s156 = smul.addr %s16, 128
          %s157 = scalar_lea.hbm %s0, %s156
          %s159 = sshll.u32 %s152, 4
          %s160 = int_to_ptr.vmem [resolvable:$true] %s159
          %162 = dma.hbm_to_vmem [thread:$0]  %s157, 128, %s160, %s149
        $region28: #{tpu_custom_call.1} parent=23 // pred_fallthru
          _
      $region24: #{tpu_custom_call.1} parent=5 // pred_fallthru
        _
      %p163 = scmp.le.s32.totalorder 1, %s16
      %p164 = scmp.lt.s32.totalorder %s16, 4
      %p165 = pnand %p163, %p164
      %p166 = pneg %p165
      // Predicated region
      $region29: #{tpu_custom_call.1} parent=5 // pred_check
        _
      $region30: #{tpu_custom_call.1} parent=5 // pred_check_branch
        %168 = sbr.rel (%p165) target = $region32
      $region31: #{tpu_custom_call.1} parent=5 // pred_region
        %s169 = ssub.s32 %s16, 1
        %s170 = sand.u32 %s29, 1
        %s171 = scalar_lea.sflag [#allocation3], %s170
        %s172 = sand.u32 %s29, 1
        %s173 = smul.addr %s172, 8
        %s174 = scalar_lea.vmem [#allocation2], %s173
        // Predicated region
        $region33: #{tpu_custom_call.1} parent=31 // pred_check
          %p175 = pneg %p42
        $region34: #{tpu_custom_call.1} parent=31 // pred_check_branch
          %177 = sbr.rel (%p175) target = $region36
        $region35: #{tpu_custom_call.1} parent=31 // pred_region
          %178 = dma.done %s171, 128
        $region36: #{tpu_custom_call.1} parent=31 // pred_fallthru
          _
        // Predicated region
        $region37: #{tpu_custom_call.1} parent=31 // pred_check
          %p179 = pneg %p63
        $region38: #{tpu_custom_call.1} parent=31 // pred_check_branch
          %181 = sbr.rel (%p179) target = $region40
        $region39: #{tpu_custom_call.1} parent=31 // pred_region
          %182 = dma.done [#allocation6], 1024
        $region40: #{tpu_custom_call.1} parent=31 // pred_fallthru
          _
        %s183 = sand.u32 %s29, 1
        %s184 = scalar_lea.sflag [#allocation3], %s183
        %s185 = sand.u32 %s29, 1
        %s186 = smul.addr %s185, 8
        %s187 = scalar_lea.vmem [#allocation2], %s186
        %p188 = pneg %p42
        %p189 = pneg %p39
        %p190 = pneg %p63
        %p191 = pneg %p60
        %p192 = pneg %p84
        %p193 = pneg %p81
        %p194 = pneg %p110
        %p195 = pneg %p107
        %s196 = sand.u32 %s97, 1
        %s197 = scalar_lea.sflag [#allocation4], %s196
        %s198 = sand.u32 %s97, 1
        %s199 = smul.addr %s198, 8
        %s200 = scalar_lea.vmem [#allocation7], %s199
        %v201 = vld [vmem:[%s174] sm:$0xff]
        %v202 = vld [vmem:[#allocation5] sm:$0xff]
        %v203 = vld [vmem:[#allocation5 + $0x8] sm:$0xff]
        %v204 = vld [vmem:[#allocation5 + $0x10] sm:$0xff]
        %v205 = vld [vmem:[#allocation5 + $0x18] sm:$0xff]
        %v206 = vld [vmem:[#allocation5 + $0x20] sm:$0xff]
        %v207 = vld [vmem:[#allocation5 + $0x28] sm:$0xff]
        %v208 = vld [vmem:[#allocation5 + $0x30] sm:$0xff]
        %v209 = vld [vmem:[#allocation5 + $0x38] sm:$0xff]
        %v210 = vld [vmem:[%s2] sm:$0x3]
        %v212 = vlaneseq
        %v213 = vshrl.u32 %v212, 7
        %v214 = vsub.s32 0, %v213
        %v215 = vrot.slane %v210, %v214
        %v216 = vlaneseq
        %v217 = vshrl.u32 %v216, 7
        %v218 = vsub.s32 1, %v217
        %v219 = vrot.slane %v210, %v218
        %vm222 = vcmask 261120
        %v224 = vsel %vm222, %v201, 0
        %226 = vmatprep.subr.mxu0 0.0
        %227 = vmatpush1.msra.mxu0 0.0
        %228 = vmatprep.subr.mxu0 0.0
        %229 = vmatpush1.msra.mxu0 0.0
        %230 = vmatprep.subr.mxu0 0.0
        %231 = vmatpush1.msra.mxu0 0.0
        %232 = vmatprep.subr.mxu0 0.0
        %233 = vmatpush1.msra.mxu0 0.0
        %234 = vmatprep.subr.mxu0 0.0
        %235 = vmatpush1.msra.mxu0 0.0
        %236 = vmatprep.subr.mxu0 0.0
        %237 = vmatpush1.msra.mxu0 0.0
        %238 = vmatprep.subr.mxu0 0.0
        %239 = vmatpush1.msra.mxu0 0.0
        %240 = vmatprep.subr.mxu0 0.0
        %241 = vmatpush1.msra.mxu0 0.0
        %242 = vmatprep.subr.mxu0 0.0
        %243 = vmatpush1.msra.mxu0 0.0
        %244 = vmatprep.subr.mxu0 0.0
        %245 = vmatpush1.msra.mxu0 0.0
        %246 = vmatprep.subr.mxu0 0.0
        %247 = vmatpush1.msra.mxu0 0.0
        %248 = vmatprep.subr.mxu0 0.0
        %249 = vmatpush1.msra.mxu0 0.0
        %250 = vmatprep.subr.mxu0 %v209
        %251 = vmatpush1.msra.mxu0 %v208
        %252 = vmatprep.subr.mxu0 %v207
        %253 = vmatpush1.msra.mxu0 %v206
        %254 = vmatprep.subr.mxu0 %v205
        %255 = vmatpush1.msra.mxu0 %v204
        %256 = vmatprep.subr.mxu0 %v203
        %257 = vmatpush1.msra.mxu0 %v202
        %258 = vmatprep.subr.mxu0 0.0
        %259 = vmatpush2.msra.mxu0 0.0
        %260 = vmatprep.subr.mxu0 0.0
        %261 = vmatpush2.msra.mxu0 0.0
        %262 = vmatprep.subr.mxu0 0.0
        %263 = vmatpush2.msra.mxu0 0.0
        %264 = vmatprep.subr.mxu0 0.0
        %265 = vmatpush2.msra.mxu0 0.0
        %266 = vmatprep.subr.mxu0 0.0
        %267 = vmatpush2.msra.mxu0 0.0
        %268 = vmatprep.subr.mxu0 0.0
        %269 = vmatpush2.msra.mxu0 0.0
        %270 = vmatprep.subr.mxu0 0.0
        %271 = vmatpush2.msra.mxu0 0.0
        %272 = vmatprep.subr.mxu0 0.0
        %273 = vmatpush2.msra.mxu0 0.0
        %274 = vmatprep.subr.mxu0 0.0
        %275 = vmatpush2.msra.mxu0 0.0
        %276 = vmatprep.subr.mxu0 0.0
        %277 = vmatpush2.msra.mxu0 0.0
        %278 = vmatprep.subr.mxu0 0.0
        %279 = vmatpush2.msra.mxu0 0.0
        %280 = vmatprep.subr.mxu0 0.0
        %281 = vmatpush2.msra.mxu0 0.0
        %282 = vmatprep.subr.mxu0 0.0
        %283 = vmatpush2.msra.mxu0 0.0
        %284 = vmatprep.subr.mxu0 0.0
        %285 = vmatpush2.msra.mxu0 0.0
        %286 = vmatprep.subr.mxu0 0.0
        %287 = vmatpush2.msra.mxu0 0.0
        %288 = vmatprep.subr.mxu0 0.0
        %289 = vmatpush2.msra.mxu0 0.0
        %290 = vmatprep.mubr.f32.mxu0 0.0
        %291 = vmatmul.mubr.f32.gmra.mxu0 %v224
        %v292 = vpop.f32.mrf.mxu0
        %v293 = vadd.f32 %v215, %v292
        %v294 = vpop.f32.mrf.mxu0
        %v295 = vadd.f32 %v219, %v294
        %296 = vdwg.mxu0
        %v297 = vand.u32 2147483647, %v293
        %vm298 = vcmp.le.f32.partialorder %v297, 0.7853982
        %vm299 = vcmp.lt.s32.totalorder %v293, 0
        %v300 = vand.u32 %v293, 2139095040
        %v301 = vshrl.u32 %v300, 23
        %v302 = vsub.s32 %v301, 127
        %v303 = vand.u32 2147483647, %v293
        %v304 = vand.u32 %v303, 8388607
        %v305 = vor.u32 %v304, 8388608
        %v306 = vsub.s32 0, %v305
        %v307 = vadd.s32 %v302, 1
        %vm308 = vcmp.gt.s32.totalorder %v307, 0
        %v309 = vsel %vm308, %v307, 0
        %v310 = vshrl.u32 %v309, 5
        %v311 = vand.u32 %v309, 31
        %v312 = vsub.s32 32, %v311
        %v313 = vshrl.u32 683565275, %v312
        %v314 = vshll.u32 683565275, %v311
        %v315 = vshrl.u32 2475754826, %v312
        %v316 = vor.u32 %v314, %v315
        %v317 = vshll.u32 2475754826, %v311
        %v318 = vshrl.u32 2131351028, %v312
        %v319 = vor.u32 %v317, %v318
        %v320 = vshll.u32 2131351028, %v311
        %v321 = vshrl.u32 2102212464, %v312
        %v322 = vor.u32 %v320, %v321
        %v323 = vshll.u32 2102212464, %v311
        %v324 = vshrl.u32 920167782, %v312
        %v325 = vor.u32 %v323, %v324
        %v326 = vshll.u32 920167782, %v311
        %v327 = vshrl.u32 1326507024, %v312
        %v328 = vor.u32 %v326, %v327
        %vm329 = vcmp.lt.s32.totalorder %v310, 1
        %vm330 = vcmp.lt.s32.totalorder %v310, 2
        %vm331 = vcmp.lt.s32.totalorder %v310, 3
        %vm332 = vcmp.lt.s32.totalorder %v310, 4
        %v333 = vsel %vm329, %v313, %v316
        %v334 = vsel %vm332, %v322, 2102212464
        %v335 = vsel %vm331, %v319, %v334
        %v336 = vsel %vm330, %v333, %v335
        %v337 = vsel %vm329, %v316, %v319
        %v338 = vsel %vm332, %v325, 920167782
        %v339 = vsel %vm331, %v322, %v338
        %v340 = vsel %vm330, %v337, %v339
        %v341 = vsel %vm329, %v319, %v322
        %v342 = vsel %vm332, %v328, 1326507024
        %v343 = vsel %vm331, %v325, %v342
        %v344 = vsel %vm330, %v341, %v343
        %v345 = vshll.u32 %v305, 8
        %v346 = vmul.u32.u64.compose %v345, %v344
        %v347 = vextract.low.u32 %v346
        %v348 = vextract.high.u32 %v346
        %v349 = vmul.u32.u64.compose %v345, %v340
        %v350 = vextract.low.u32 %v349
        %v351 = vextract.high.u32 %v349
        %v352 = vmul.u32 %v345, %v336
        %v353 = vadd.s32 %v348, %v350
        %vm354 = vc.u32 %v348, %v350
        %v355 = vadd.s32 %v351, 1
        %v356 = vsel %vm354, %v355, %v351
        %v357 = vadd.s32 %v352, %v356
        %v358 = vadd.s32 %v357, 536870912
        %v359 = vshrl.u32 %v358, 30
        %v360 = vshll.u32 %v359, 30
        %v361 = vsub.s32 %v357, %v360
        %vm362 = vcmp.lt.s32.totalorder %v361, 0
        %v363 = vsub.s32 0, %v361
        %v364 = vsel %vm362, %v363, %v361
        %v365 = vclz %v364
        %v366 = vsub.s32 %v365, 2
        %vm367 = vcmp.gt.s32.totalorder 0, %v366
        %v368 = vsel %vm367, 0, %v366
        %v369 = vsub.s32 32, %v368
        %v370 = vshll.u32 %v361, %v368
        %v371 = vshrl.u32 %v353, %v369
        %v372 = vor.u32 %v370, %v371
        %v373 = vsub.s32 4294967266, %v368
        %v374 = vadd.s32 %v373, 127
        %v375 = vshll.u32 %v374, 23
        %v376 = vor.u32 4788187, %v375
        %v377 = vand.u32 2147483647, %v376
        %v379 = vcvt.s32.f32 %v372
        %v380 = vmul.f32 %v379, %v377
        %v381 = vxor.u32 %v380, 2147483648
        %v382 = vsel %vm299, %v381, %v380
        %v383 = vsub.s32 4, %v359
        %v384 = vsel %vm299, %v383, %v359
        %v385 = vsel %vm298, %v293, %v382
        %v386 = vsel %vm298, 0, %v384
        %v387 = vcosq.f32.pop %v385
        %v388 = vsinq.f32.pop %v385
        %vm389 = vweird.f32 %v293
        %v390 = vadd.s32 %v386, 3
        %v391 = vand.u32 %v390, 3
        %vm392 = vcmp.lt.s32.totalorder %v391, 2
        %vm393 = vcmp.eq.s32.totalorder %v391, 0
        %v394 = vxor.u32 %v388, 2147483648
        %v395 = vsel %vm393, %v387, %v394
        %vm396 = vcmp.eq.s32.totalorder %v391, 2
        %v397 = vxor.u32 %v387, 2147483648
        %v398 = vsel %vm396, %v397, %v388
        %v399 = vsel %vm392, %v395, %v398
        %v400 = vsel %vm389, nan, %v399
        %v401 = vadd.f32 %v400, %v295
        %v402 = vmax.f32 %v401, 0.0
        %403 = vst [vmem:[%s200] sm:$0xff] %v402
        %s404 = sand.u32 %s97, 1
        %s405 = scalar_lea.sflag [#allocation4], %s404
        %s406 = sand.u32 %s97, 1
        %s407 = smul.addr %s406, 8
        %s408 = scalar_lea.vmem [#allocation7], %s407
        // Predicated region
        $region41: #{tpu_custom_call.1} parent=31 // pred_check
          %p409 = pneg %p107
        $region42: #{tpu_custom_call.1} parent=31 // pred_check_branch
          %411 = sbr.rel (%p409) target = $region44
        $region43: #{tpu_custom_call.1} parent=31 // pred_region
          %s413 = ssub.s32 128, 128
          %414 = vsyncadd %s405, %s413
          %s415 = smul.addr %s21, 128
          %s416 = scalar_lea.hbm %s3, %s415
          %s418 = sshll.u32 %s408, 4
          %s419 = int_to_ptr.vmem [resolvable:$true] %s418
          %421 = dma.vmem_to_hbm [thread:$0]  %s419, 128, %s416, %s405
        $region44: #{tpu_custom_call.1} parent=31 // pred_fallthru
          _
      $region32: #{tpu_custom_call.1} parent=5 // pred_fallthru
        _
      %p422 = scmp.le.s32.totalorder 2, %s16
      // Predicated region
      $region45: #{tpu_custom_call.1} parent=5 // pred_check
        %p423 = pneg %p422
      $region46: #{tpu_custom_call.1} parent=5 // pred_check_branch
        %425 = sbr.rel (%p423) target = $region48
      $region47: #{tpu_custom_call.1} parent=5 // pred_region
        %s426 = ssub.s32 %s16, 2
        // Predicated region
        $region49: #{tpu_custom_call.1} parent=47 // pred_check
          %p427 = pneg %p113
        $region50: #{tpu_custom_call.1} parent=47 // pred_check_branch
          %429 = sbr.rel (%p427) target = $region52
        $region51: #{tpu_custom_call.1} parent=47 // pred_region
          %s430 = sand.u32 %s98, 1
          %s431 = scalar_lea.sflag [#allocation4], %s430
          %s432 = sand.u32 %s98, 1
          %s433 = smul.addr %s432, 8
          %s434 = scalar_lea.vmem [#allocation7], %s433
          %435 = dma.done %s431, 128
        $region52: #{tpu_custom_call.1} parent=47 // pred_fallthru
          _
      $region48: #{tpu_custom_call.1} parent=5 // pred_fallthru
        _
    $region6: #{tpu_custom_call.1} parent=1 // loop_footer
      %s20 = sadd.s32 1, %s16
    $region7: #{tpu_custom_call.1} parent=1 // loop_footer_branch
      %15 = sbr.rel target = $region3
    $region8: #{tpu_custom_call.1} parent=1 // loop_exit
      _
    %436 = vsyncpa [#allocation3], 1
    %s437 = scalar_lea.sflag [#allocation3], 1
    %438 = vsyncpa %s437, 1
    %439 = vsyncpa [#allocation6], 1
    %440 = vsyncpa [#allocation4], 1
    %s441 = scalar_lea.sflag [#allocation4], 1
    %442 = vsyncpa %s441, 1

</llo_original>
